<compile_context>
chip_gen: v7x
topology: tpu7x:2x2x1
jax: 0.10.0
libtpu: 0.0.40
codegen_flags: <defaults>
</compile_context>

<pallas_src>
import functools

import jax
import jax.numpy as jnp
from jax.experimental import pallas as pl
from jax.experimental.pallas import tpu as pltpu


def _round_up(a, b):
    return ((a + b - 1) // b) * b


def _vmem_budget_bytes():
    """Per-generation VMEM budget (v5e/v6e: 128 MiB physical, v7x: only 64 MiB)."""
    cap = 64 * 1024 * 1024  # conservative fallback == v7x physical VMEM
    try:
        info = pltpu.get_tpu_info()
        cap = int(getattr(info, "vmem_capacity_bytes", cap) or cap)
    except Exception:
        pass
    # 75% of physical, clamped, leaving headroom for compiler-internal scratch.
    return max(32 * 1024 * 1024, min(int(cap * 0.75), 96 * 1024 * 1024))


def prepare_weights(w_query, w_key, w_value):
    """One-time weight prep (hoist out of the per-call path and reuse across calls):
    fold 1/sqrt(d_out) into Wq, fuse [Wk | Wv] into one operand, zero-pad the output (lane)
    dim to a multiple of 128 so every kernel store is lane-dense, and cast to bf16."""
    d_in, d_out = w_query.shape
    d_pad = _round_up(d_out, 128)
    scale = 1.0 / float(d_out) ** 0.5
    wq = jnp.zeros((d_in, d_pad), jnp.float32).at[:, :d_out].set(
        w_query.astype(jnp.float32) * scale)
    wkv = jnp.zeros((d_in, 2 * d_pad), jnp.float32)
    wkv = wkv.at[:, :d_out].set(w_key.astype(jnp.float32))
    wkv = wkv.at[:, d_pad:d_pad + d_out].set(w_value.astype(jnp.float32))
    return wq.astype(jnp.bfloat16), wkv.astype(jnp.bfloat16), d_out


# -----------------------------------------------------------------------------------
# Fused kernel: QKV projection + flash attention (online softmax).
# grid = (num_q_tiles [parallel], num_kv_tiles [arbitrary])
# -----------------------------------------------------------------------------------
def _fused_attn_kernel(xq_ref, xkv_ref, wq_ref, wkv_ref, o_ref,
                       q_sc, m_sc, l_sc, acc_sc,
                       *, d_pad, seq_len, kv_tile, needs_mask):
    ki = pl.program_id(1)
    n_kv = pl.num_programs(1)

    # New q tile: project q once (Wq already carries the 1/sqrt(d_out) scale), reset state.
    @pl.when(ki == 0)
    def _():
        q = jnp.dot(xq_ref[...], wq_ref[...], preferred_element_type=jnp.float32)
        q_sc[...] = q.astype(jnp.bfloat16)
        m_sc[...] = jnp.full_like(m_sc, -jnp.inf)
        l_sc[...] = jnp.zeros_like(l_sc)
        acc_sc[...] = jnp.zeros_like(acc_sc)

    # Project K and V for this kv tile with one fused MXU push; 128-aligned column split.
    kv = jnp.dot(xkv_ref[...], wkv_ref[...], preferred_element_type=jnp.float32)
    k = kv[:, :d_pad].astype(jnp.bfloat16)
    v = kv[:, d_pad:].astype(jnp.bfloat16)

    # Scores tile: q @ k^T via dot_general (no explicit XLU transpose of k).
    s = jax.lax.dot_general(
        q_sc[...], k,
        dimension_numbers=(((1,), (1,)), ((), ())),
        preferred_element_type=jnp.float32)                       # (tq, tk) f32

    if needs_mask:
        # Sequence padding only lives in the LAST kv tile (Tp - T < tk by construction,
        # so the tile is never fully masked); gate the mask there so all other kv steps
        # pay zero VPU cost for it.
        def _mask_tail(sv):
            col = jax.lax.broadcasted_iota(jnp.int32, sv.shape, 1) + ki * kv_tile
            return jnp.where(col < seq_len, sv, -1e30)
        s = jax.lax.cond(ki == n_kv - 1, _mask_tail, lambda sv: sv, s)

    # Online softmax update (f32).
    m_prev = m_sc[...]
    m_new = jnp.maximum(m_prev, jnp.max(s, axis=-1, keepdims=True))
    alpha = jnp.exp(m_prev - m_new)
    p = jnp.exp(s - m_new)
    l_sc[...] = alpha * l_sc[...] + jnp.sum(p, axis=-1, keepdims=True)
    acc_sc[...] = alpha * acc_sc[...] + jnp.dot(
        p.astype(jnp.bfloat16), v, preferred_element_type=jnp.float32)
    m_sc[...] = m_new

    # Finalize once per q tile (exact divide; runs once, cost negligible).
    @pl.when(ki == n_kv - 1)
    def _():
        o_ref[...] = (acc_sc[...] / l_sc[...]).astype(o_ref.dtype)


# -----------------------------------------------------------------------------------
# Tile selection: modest tq, VMEM-budget-driven tk (tk is a multiple of tq).
# -----------------------------------------------------------------------------------
def _choose_tiles(T, d_in, d_pad, vmem_limit):
    # Query tile: keeps the 'parallel' q axis >= 2 iterations for v7x megacore whenever
    # T allows.  When shrinking the grid we grow tk, not tq.
    tq = min(256, _round_up(max(T, 1), 8))

    # KV tile: as large as the VMEM budget allows (cuts repeated x_kv DMAs and the
    # ~0.35us/step grid overhead), multiple of tq, capped at 2048.
    fixed = (2 * tq * d_in * 2              # x_q block (bf16, double-buffered)
             + 6 * d_in * d_pad * 2         # Wq + [Wk|Wv] blocks (bf16, double-buffered)
             + 2 * tq * d_pad * 4           # output block (f32, double-buffered)
             + tq * d_pad * (2 + 4)         # q (bf16) + acc (f32) scratch
             + 2 * tq * 128 * 4)            # m/l scratch (vreg-padded)
    per_col = (4 * d_in                     # x_kv block (bf16, double-buffered)
               + 12 * d_pad                 # kv f32 + k/v bf16 temporaries
               + 10 * tq)                   # s/p f32 + p bf16 temporaries
    usable = int(vmem_limit * 0.6)
    tk = max(tq, (usable - fixed) // per_col)
    tk = min(2048, tk)
    tk = max(tq, (tk // tq) * tq)

    # Single kv tile when the whole padded sequence fits the budget.
    min_pad = _round_up(T, tq)
    if tk >= min_pad:
        tk = min_pad
    Tp = _round_up(T, tk)                   # tq | tk | Tp, and Tp - T < tk
    return tq, tk, Tp


# -----------------------------------------------------------------------------------
# Wrapper
# -----------------------------------------------------------------------------------
def self_attention_v1(x, w_query=None, w_key=None, w_value=None, *,
                      prepared=None, tq=None, tk=None):
    """Pallas forward of SelfAttention_v1.  x: (T, d_in) float32 -> (T, d_out) float32."""
    if prepared is None:
        prepared = prepare_weights(w_query, w_key, w_value)
    wq, wkv, d_out = prepared
    d_in, d_pad = wq.shape
    T = x.shape[0]
    assert x.shape[1] == d_in

    vmem_limit = _vmem_budget_bytes()
    tq_def, tk_def, _ = _choose_tiles(T, d_in, d_pad, vmem_limit)
    tq = tq_def if tq is None else tq
    tk = tk_def if tk is None else tk
    assert tq % 8 == 0 and tk % tq == 0, (tq, tk)
    Tp = _round_up(T, tk)
    needs_mask = Tp != T

    # Only the sequence axis is padded; cast to bf16 once here so the kernel never
    # re-casts per step and x_kv HBM re-reads (once per q tile) are half-width.
    x_p = jnp.pad(x.astype(jnp.bfloat16), ((0, Tp - T), (0, 0)))

    kernel = functools.partial(_fused_attn_kernel, d_pad=d_pad, seq_len=T,
                               kv_tile=tk, needs_mask=needs_mask)

    out_p = pl.pallas_call(
        kernel,
        out_shape=jax.ShapeDtypeStruct((Tp, d_pad), jnp.float32),
        grid_spec=pltpu.PrefetchScalarGridSpec(
            num_scalar_prefetch=0,
            grid=(Tp // tq, Tp // tk),
            in_specs=[
                pl.BlockSpec((tq, d_in), lambda qi, ki: (qi, 0)),        # x rows -> queries
                # TODO(synk): add pipeline_mode=pl.Buffered(3) below if a v5e profile shows
                # exposed x_kv DMA (left at the default depth to save VMEM on v7x).
                pl.BlockSpec((tk, d_in), lambda qi, ki: (ki, 0)),        # x rows -> keys/values
                pl.BlockSpec((d_in, d_pad), lambda qi, ki: (0, 0)),      # Wq (scaled, lane-padded)
                pl.BlockSpec((d_in, 2 * d_pad), lambda qi, ki: (0, 0)),  # [Wk | Wv] (lane-padded)
            ],
            out_specs=pl.BlockSpec((tq, d_pad), lambda qi, ki: (qi, 0)),
            scratch_shapes=[
                pltpu.VMEM((tq, d_pad), jnp.bfloat16),   # q tile (pre-scaled)
                pltpu.VMEM((tq, 1), jnp.float32),        # running max
                pltpu.VMEM((tq, 1), jnp.float32),        # running denominator
                pltpu.VMEM((tq, d_pad), jnp.float32),    # output accumulator
            ],
        ),
        compiler_params=pltpu.CompilerParams(
            dimension_semantics=("parallel", "arbitrary"),
            vmem_limit_bytes=vmem_limit),
    )(x_p, x_p, wq, wkv)

    if Tp == T and d_pad == d_out:
        return out_p
    return out_p[:T, :d_out]


def self_attention_v1_ref(x, w_query, w_key, w_value):
    """Pure-JAX reference mirroring the PyTorch module exactly (f32)."""
    keys = x @ w_key
    queries = x @ w_query
    values = x @ w_value
    attn_scores = queries @ keys.T
    attn_weights = jax.nn.softmax(attn_scores / keys.shape[-1] ** 0.5, axis=-1)
    return attn_weights @ values


if __name__ == "__main__":
    key = jax.random.PRNGKey(0)
    kq, kk, kv, k2, k3 = jax.random.split(key, 5)

    # --- Test 1: the chapter's example input (6 tokens, d_in=3, d_out=2) ---
    x = jnp.array(
        [[0.43, 0.15, 0.89],
         [0.55, 0.87, 0.66],
         [0.57, 0.85, 0.64],
         [0.22, 0.58, 0.33],
         [0.77, 0.25, 0.10],
         [0.05, 0.80, 0.55]],
        dtype=jnp.float32,
    )
    d_in, d_out = x.shape[1], 2
    w_query = jax.random.uniform(kq, (d_in, d_out), dtype=jnp.float32)
    w_key = jax.random.uniform(kk, (d_in, d_out), dtype=jnp.float32)
    w_value = jax.random.uniform(kv, (d_in, d_out), dtype=jnp.float32)

    out = self_attention_v1(x, w_query, w_key, w_value)
    jax.block_until_ready(out)
    ref = self_attention_v1_ref(x, w_query, w_key, w_value)
    assert out.shape == (x.shape[0], d_out)
    # bf16 MXU operands -> loosened tolerance vs f32 reference.
    assert jnp.allclose(out, ref, atol=2e-2, rtol=2e-2), (out, ref)

    # --- Test 2: multi-tile flash path (grid (4, 2)), mask gated onto the last kv tile ---
    T2, d_in2, d_out2 = 100, 16, 8
    ka, kb, kc, kd = jax.random.split(k2, 4)
    x2 = 0.1 * jax.random.normal(ka, (T2, d_in2), dtype=jnp.float32)
    wq2 = 0.1 * jax.random.normal(kb, (d_in2, d_out2), dtype=jnp.float32)
    wk2 = 0.1 * jax.random.normal(kc, (d_in2, d_out2), dtype=jnp.float32)
    wv2 = 0.1 * jax.random.normal(kd, (d_in2, d_out2), dtype=jnp.float32)

    out2 = self_attention_v1(x2, wq2, wk2, wv2, tq=32, tk=64)   # Tp=128, ragged tail masked
    jax.block_until_ready(out2)
    ref2 = self_attention_v1_ref(x2, wq2, wk2, wv2)
    assert out2.shape == (T2, d_out2)
    assert jnp.allclose(out2, ref2, atol=2e-2, rtol=2e-2), (out2, ref2)

    # --- Test 3: default (auto) tiling with >=2 q tiles + hoisted/reused weight prep ---
    T3, d_in3, d_out3 = 300, 8, 4
    ke, kf, kg, kh = jax.random.split(k3, 4)
    x3 = 0.1 * jax.random.normal(ke, (T3, d_in3), dtype=jnp.float32)
    wq3 = 0.1 * jax.random.normal(kf, (d_in3, d_out3), dtype=jnp.float32)
    wk3 = 0.1 * jax.random.normal(kg, (d_in3, d_out3), dtype=jnp.float32)
    wv3 = 0.1 * jax.random.normal(kh, (d_in3, d_out3), dtype=jnp.float32)

    prepared3 = prepare_weights(wq3, wk3, wv3)       # one-time prep, reused across calls
    out3 = self_attention_v1(x3, prepared=prepared3)
    out3b = self_attention_v1(x3, prepared=prepared3)
    jax.block_until_ready((out3, out3b))
    ref3 = self_attention_v1_ref(x3, wq3, wk3, wv3)
    assert out3.shape == (T3, d_out3)
    assert jnp.allclose(out3, ref3, atol=2e-2, rtol=2e-2), (out3, ref3)
    assert jnp.allclose(out3b, out3)

    print("KERNEL_OK")
</pallas_src>

<mosaic_0001>
module attributes {stable_mosaic.version = 11 : i64} {
  func.func @_fused_attn_kernel(%arg0: i32, %arg1: i32, %arg2: memref<8x3xbf16, #tpu.memory_space<vmem>>, %arg3: memref<8x3xbf16, #tpu.memory_space<vmem>>, %arg4: memref<3x128xbf16, #tpu.memory_space<vmem>>, %arg5: memref<3x256xbf16, #tpu.memory_space<vmem>>, %arg6: memref<8x128xf32, #tpu.memory_space<vmem>>, %arg7: memref<8x128xbf16, #tpu.memory_space<vmem>>, %arg8: memref<8x1xf32, #tpu.memory_space<vmem>>, %arg9: memref<8x1xf32, #tpu.memory_space<vmem>>, %arg10: memref<8x128xf32, #tpu.memory_space<vmem>>) attributes {dimension_semantics = [#tpu.dimension_semantics<parallel>, #tpu.dimension_semantics<arbitrary>], iteration_bounds = array<i64: 1, 1>, scalar_prefetch = 0 : i64, scratch_operands = 4 : i64, tpu.core_type = #tpu.core_type<tc>, window_params = [{transform_indices = @transform_0, window_bounds = array<i64: 8, 3>}, {transform_indices = @transform_1, window_bounds = array<i64: 8, 3>}, {pipeline_mode = #tpu.pipeline_mode<synchronous>, transform_indices = @transform_2, window_bounds = array<i64: 3, 128>}, {pipeline_mode = #tpu.pipeline_mode<synchronous>, transform_indices = @transform_3, window_bounds = array<i64: 3, 256>}, {transform_indices = @transform_4, window_bounds = array<i64: 8, 128>}]} {
    %c0_i32 = arith.constant 0 : i32
    %0 = arith.cmpi eq, %arg1, %c0_i32 : i32
    %1 = arith.extui %0 : i1 to i32
    %c0_i32_0 = arith.constant 0 : i32
    %2 = arith.cmpi ne, %1, %c0_i32_0 : i32
    scf.if %2 {
      %c0_26 = arith.constant 0 : index
      %c0_27 = arith.constant 0 : index
      %42 = vector.load %arg2[%c0_26, %c0_27] : memref<8x3xbf16, #tpu.memory_space<vmem>>, vector<8x3xbf16>
      %c0_28 = arith.constant 0 : index
      %c0_29 = arith.constant 0 : index
      %43 = vector.load %arg4[%c0_28, %c0_29] : memref<3x128xbf16, #tpu.memory_space<vmem>>, vector<3x128xbf16>
      %cst_30 = arith.constant dense<0.000000e+00> : vector<8x128xf32>
      %44 = tpu.matmul %42, %43, %cst_30 {dimension_numbers = #tpu.dot_dimension_numbers<[1], [0], [0], [1], [0, 0, 1, 1], [], []>} : vector<8x3xbf16>, vector<3x128xbf16>, vector<8x128xf32> -> vector<8x128xf32>
      %45 = arith.truncf %44 : vector<8x128xf32> to vector<8x128xbf16>
      %c0_31 = arith.constant 0 : index
      %c0_32 = arith.constant 0 : index
      %46 = vector.load %arg7[%c0_31, %c0_32] : memref<8x128xbf16, #tpu.memory_space<vmem>>, vector<8x128xbf16>
      tpu.vector_store %arg7[%c0_31, %c0_32], %45 {strides = array<i32>} : memref<8x128xbf16, #tpu.memory_space<vmem>>, vector<8x128xbf16>,
      %cst_33 = arith.constant 0xFF800000 : f32
      %47 = vector.broadcast %cst_33 : f32 to vector<8x1xf32>
      %c0_34 = arith.constant 0 : index
      %c0_35 = arith.constant 0 : index
      %48 = vector.load %arg8[%c0_34, %c0_35] : memref<8x1xf32, #tpu.memory_space<vmem>>, vector<8x1xf32>
      tpu.vector_store %arg8[%c0_34, %c0_35], %47 {strides = array<i32>} : memref<8x1xf32, #tpu.memory_space<vmem>>, vector<8x1xf32>,
      %cst_36 = arith.constant 0.000000e+00 : f32
      %49 = vector.broadcast %cst_36 : f32 to vector<8x1xf32>
      %c0_37 = arith.constant 0 : index
      %c0_38 = arith.constant 0 : index
      %50 = vector.load %arg9[%c0_37, %c0_38] : memref<8x1xf32, #tpu.memory_space<vmem>>, vector<8x1xf32>
      tpu.vector_store %arg9[%c0_37, %c0_38], %49 {strides = array<i32>} : memref<8x1xf32, #tpu.memory_space<vmem>>, vector<8x1xf32>,
      %cst_39 = arith.constant 0.000000e+00 : f32
      %51 = vector.broadcast %cst_39 : f32 to vector<8x128xf32>
      %c0_40 = arith.constant 0 : index
      %c0_41 = arith.constant 0 : index
      %52 = vector.load %arg10[%c0_40, %c0_41] : memref<8x128xf32, #tpu.memory_space<vmem>>, vector<8x128xf32>
      tpu.vector_store %arg10[%c0_40, %c0_41], %51 {strides = array<i32>} : memref<8x128xf32, #tpu.memory_space<vmem>>, vector<8x128xf32>,
    } else {
    }
    %c0 = arith.constant 0 : index
    %c0_1 = arith.constant 0 : index
    %3 = vector.load %arg3[%c0, %c0_1] : memref<8x3xbf16, #tpu.memory_space<vmem>>, vector<8x3xbf16>
    %c0_2 = arith.constant 0 : index
    %c0_3 = arith.constant 0 : index
    %4 = vector.load %arg5[%c0_2, %c0_3] : memref<3x256xbf16, #tpu.memory_space<vmem>>, vector<3x256xbf16>
    %cst = arith.constant dense<0.000000e+00> : vector<8x256xf32>
    %5 = tpu.matmul %3, %4, %cst {dimension_numbers = #tpu.dot_dimension_numbers<[1], [0], [0], [1], [0, 0, 1, 1], [], []>} : vector<8x3xbf16>, vector<3x256xbf16>, vector<8x256xf32> -> vector<8x256xf32>
    %6 = vector.extract_strided_slice %5 {offsets = [0, 0], sizes = [8, 128], strides = [1, 1]} : vector<8x256xf32> to vector<8x128xf32>
    %7 = arith.truncf %6 : vector<8x128xf32> to vector<8x128xbf16>
    %8 = vector.extract_strided_slice %5 {offsets = [0, 128], sizes = [8, 128], strides = [1, 1]} : vector<8x256xf32> to vector<8x128xf32>
    %9 = arith.truncf %8 : vector<8x128xf32> to vector<8x128xbf16>
    %c0_4 = arith.constant 0 : index
    %c0_5 = arith.constant 0 : index
    %10 = vector.load %arg7[%c0_4, %c0_5] : memref<8x128xbf16, #tpu.memory_space<vmem>>, vector<8x128xbf16>
    %cst_6 = arith.constant dense<0.000000e+00> : vector<8x8xf32>
    %11 = tpu.matmul %10, %7, %cst_6 {dimension_numbers = #tpu.dot_dimension_numbers<[1], [1], [0], [0], [0, 0, 1, 0], [], []>} : vector<8x128xbf16>, vector<8x128xbf16>, vector<8x8xf32> -> vector<8x8xf32>
    %c0_i32_7 = arith.constant 0 : i32
    %12 = arith.cmpi eq, %arg1, %c0_i32_7 : i32
    %13 = arith.extui %12 : i1 to i32
    %c0_i32_8 = arith.constant 0 : i32
    %14 = arith.cmpi ne, %13, %c0_i32_8 : i32
    %15 = scf.if %14 -> (vector<8x8xf32>) {
      %42 = tpu.iota {dimensions = array<i32: 1>} : vector<8x8xi32>
      %c8_i32 = arith.constant 8 : i32
      %43 = arith.muli %arg1, %c8_i32 : i32
      %44 = vector.broadcast %43 : i32 to vector<8x8xi32>
      %45 = arith.addi %42, %44 : vector<8x8xi32>
      %c6_i32 = arith.constant 6 : i32
      %46 = vector.broadcast %c6_i32 : i32 to vector<8x8xi32>
      %47 = arith.cmpi slt, %45, %46 : vector<8x8xi32>
      %cst_26 = arith.constant -1.000000e+30 : f32
      %48 = vector.broadcast %cst_26 : f32 to vector<8x8xf32>
      %49 = arith.select %47, %11, %48 : vector<8x8xi1>, vector<8x8xf32>
      scf.yield %49 : vector<8x8xf32>
    } else {
      scf.yield %11 : vector<8x8xf32>
    }
    %c0_9 = arith.constant 0 : index
    %c0_10 = arith.constant 0 : index
    %16 = vector.load %arg8[%c0_9, %c0_10] : memref<8x1xf32, #tpu.memory_space<vmem>>, vector<8x1xf32>
    %cst_11 = arith.constant dense<0xFF800000> : vector<8xf32>
    %17 = vector.multi_reduction <maximumf>, %15, %cst_11 [1] : vector<8x8xf32> to vector<8xf32>
    %18 = vector.shape_cast %17 : vector<8xf32> to vector<8x1xf32>
    %19 = arith.maximumf %16, %18 : vector<8x1xf32>
    %20 = arith.subf %16, %19 : vector<8x1xf32>
    %21 = math.exp %20 : vector<8x1xf32>
    %22 = vector.broadcast %19 : vector<8x1xf32> to vector<8x8xf32>
    %23 = arith.subf %15, %22 : vector<8x8xf32>
    %24 = math.exp %23 : vector<8x8xf32>
    %c0_12 = arith.constant 0 : index
    %c0_13 = arith.constant 0 : index
    %25 = vector.load %arg9[%c0_12, %c0_13] : memref<8x1xf32, #tpu.memory_space<vmem>>, vector<8x1xf32>
    %26 = arith.mulf %21, %25 : vector<8x1xf32>
    %cst_14 = arith.constant dense<0.000000e+00> : vector<8xf32>
    %27 = vector.multi_reduction <add>, %24, %cst_14 [1] : vector<8x8xf32> to vector<8xf32>
    %28 = vector.shape_cast %27 : vector<8xf32> to vector<8x1xf32>
    %29 = arith.addf %26, %28 : vector<8x1xf32>
    %c0_15 = arith.constant 0 : index
    %c0_16 = arith.constant 0 : index
    %30 = vector.load %arg9[%c0_15, %c0_16] : memref<8x1xf32, #tpu.memory_space<vmem>>, vector<8x1xf32>
    tpu.vector_store %arg9[%c0_15, %c0_16], %29 {strides = array<i32>} : memref<8x1xf32, #tpu.memory_space<vmem>>, vector<8x1xf32>,
    %c0_17 = arith.constant 0 : index
    %c0_18 = arith.constant 0 : index
    %31 = vector.load %arg10[%c0_17, %c0_18] : memref<8x128xf32, #tpu.memory_space<vmem>>, vector<8x128xf32>
    %32 = vector.broadcast %21 : vector<8x1xf32> to vector<8x128xf32>
    %33 = arith.mulf %32, %31 : vector<8x128xf32>
    %34 = arith.truncf %24 : vector<8x8xf32> to vector<8x8xbf16>
    %cst_19 = arith.constant dense<0.000000e+00> : vector<8x128xf32>
    %35 = tpu.matmul %34, %9, %cst_19 {dimension_numbers = #tpu.dot_dimension_numbers<[1], [0], [0], [1], [0, 0, 1, 1], [], []>} : vector<8x8xbf16>, vector<8x128xbf16>, vector<8x128xf32> -> vector<8x128xf32>
    %36 = arith.addf %33, %35 : vector<8x128xf32>
    %c0_20 = arith.constant 0 : index
    %c0_21 = arith.constant 0 : index
    %37 = vector.load %arg10[%c0_20, %c0_21] : memref<8x128xf32, #tpu.memory_space<vmem>>, vector<8x128xf32>
    tpu.vector_store %arg10[%c0_20, %c0_21], %36 {strides = array<i32>} : memref<8x128xf32, #tpu.memory_space<vmem>>, vector<8x128xf32>,
    %c0_22 = arith.constant 0 : index
    %c0_23 = arith.constant 0 : index
    %38 = vector.load %arg8[%c0_22, %c0_23] : memref<8x1xf32, #tpu.memory_space<vmem>>, vector<8x1xf32>
    tpu.vector_store %arg8[%c0_22, %c0_23], %19 {strides = array<i32>} : memref<8x1xf32, #tpu.memory_space<vmem>>, vector<8x1xf32>,
    %c0_i32_24 = arith.constant 0 : i32
    %39 = arith.cmpi eq, %arg1, %c0_i32_24 : i32
    %40 = arith.extui %39 : i1 to i32
    %c0_i32_25 = arith.constant 0 : i32
    %41 = arith.cmpi ne, %40, %c0_i32_25 : i32
    scf.if %41 {
      %c0_26 = arith.constant 0 : index
      %c0_27 = arith.constant 0 : index
      %42 = vector.load %arg10[%c0_26, %c0_27] : memref<8x128xf32, #tpu.memory_space<vmem>>, vector<8x128xf32>
      %c0_28 = arith.constant 0 : index
      %c0_29 = arith.constant 0 : index
      %43 = vector.load %arg9[%c0_28, %c0_29] : memref<8x1xf32, #tpu.memory_space<vmem>>, vector<8x1xf32>
      %44 = vector.broadcast %43 : vector<8x1xf32> to vector<8x128xf32>
      %45 = arith.divf %42, %44 : vector<8x128xf32>
      %c0_30 = arith.constant 0 : index
      %c0_31 = arith.constant 0 : index
      %46 = vector.load %arg6[%c0_30, %c0_31] : memref<8x128xf32, #tpu.memory_space<vmem>>, vector<8x128xf32>
      tpu.vector_store %arg6[%c0_30, %c0_31], %45 {strides = array<i32>} : memref<8x128xf32, #tpu.memory_space<vmem>>, vector<8x128xf32>,
    } else {
    }
    return
  }
  func.func @transform_0(%arg0: i32, %arg1: i32) -> (i32, i32) {
    %c0_i32 = arith.constant 0 : i32
    %c0_i32_0 = arith.constant 0 : i32
    return %arg0, %c0_i32 : i32, i32
  }
  func.func @transform_1(%arg0: i32, %arg1: i32) -> (i32, i32) {
    %c0_i32 = arith.constant 0 : i32
    %c0_i32_0 = arith.constant 0 : i32
    return %arg1, %c0_i32 : i32, i32
  }
  func.func @transform_2(%arg0: i32, %arg1: i32) -> (i32, i32) {
    %c0_i32 = arith.constant 0 : i32
    %c0_i32_0 = arith.constant 0 : i32
    %c0_i32_1 = arith.constant 0 : i32
    return %c0_i32, %c0_i32_0 : i32, i32
  }
  func.func @transform_3(%arg0: i32, %arg1: i32) -> (i32, i32) {
    %c0_i32 = arith.constant 0 : i32
    %c0_i32_0 = arith.constant 0 : i32
    %c0_i32_1 = arith.constant 0 : i32
    return %c0_i32, %c0_i32_0 : i32, i32
  }
  func.func @transform_4(%arg0: i32, %arg1: i32) -> (i32, i32) {
    %c0_i32 = arith.constant 0 : i32
    %c0_i32_0 = arith.constant 0 : i32
    return %arg0, %c0_i32 : i32, i32
  }
}

</mosaic_0001>

<llo_original>
// kernel: tpu_custom_call.1
$region0: #{tpu_custom_call.1}
  #allocation0 [shape = 'u32[]', space=smem, size = 0x4, offset = 0x4, fixed_abs, tag = 'smem constant byte address 0x4 - core index']
  #allocation1 [shape = 'u32[144,128]{1,0:T(1,128)}', space=vmem, size = 0x12000, scoped, tag = 'internal scratch']
  #allocation2 [shape = 'bf16[8,128]{1,0:T(8,128)(2,1)}', space=vmem, size = 0x800, scoped, tag = 'scratch operand']
  #allocation3 [shape = 'f32[8,1]{1,0:T(8,128)}', space=vmem, size = 0x1000, scoped, tag = 'scratch operand']
  #allocation4 [shape = 'f32[8,1]{1,0:T(8,128)}', space=vmem, size = 0x1000, scoped, tag = 'scratch operand']
  #allocation5 [shape = 'f32[8,128]{1,0:T(8,128)}', space=vmem, size = 0x1000, scoped, tag = 'scratch operand']
  %s0 = inlined_call_operand.vmem [shape: bf16[8,3], index: 0, kind: input, shape index: {}]
  %s1 = inlined_call_operand.vmem [shape: bf16[8,3], index: 1, kind: input, shape index: {}]
  %s2 = inlined_call_operand.vmem [shape: bf16[3,128], index: 2, kind: input, shape index: {}]
  %s3 = inlined_call_operand.vmem [shape: bf16[3,256], index: 3, kind: input, shape index: {}]
  %s4 = inlined_call_operand.hbm [shape: f32[8,128], index: 4, kind: output, shape index: {}]
  %s5 = sld [smem:[#allocation0]]
  $region42: #{tpu_custom_call.1} parent=0
    _
  %s7 = ssub.s32 1, %s5
  %s8 = scalar_select 0, %s7, %s5
  $region1: #{tpu_custom_call.1} parent=0
    #allocation6 [shape = 'u8[4096]{0}', space=vmem, size = 0x1000, scoped, tag = 'output window, operand 0, single buffered']
    #allocation7 [shape = 's32[1]{0}', space=sflag, size = 0x4, scoped, tag = 'scoped memory for tpu_custom_call.1']
    %9 = vsyncpa [#allocation7], 0
    // Predicated region
    $region2: #{tpu_custom_call.1} parent=1 // pred_check
      _
    $region3: #{tpu_custom_call.1} parent=1 // pred_check_branch
      %11 = sbr.rel (0) target = $region5
    $region4: #{tpu_custom_call.1} parent=1 // pred_region
      _
    $region5: #{tpu_custom_call.1} parent=1 // pred_fallthru
      _
    // Predicated region
    $region6: #{tpu_custom_call.1} parent=1 // pred_check
      _
    $region7: #{tpu_custom_call.1} parent=1 // pred_check_branch
      %13 = sbr.rel (0) target = $region9
    $region8: #{tpu_custom_call.1} parent=1 // pred_region
      _
    $region9: #{tpu_custom_call.1} parent=1 // pred_fallthru
      _
    // Predicated region
    $region10: #{tpu_custom_call.1} parent=1 // pred_check
      _
    $region11: #{tpu_custom_call.1} parent=1 // pred_check_branch
      %15 = sbr.rel (0) target = $region13
    $region12: #{tpu_custom_call.1} parent=1 // pred_region
      _
    $region13: #{tpu_custom_call.1} parent=1 // pred_fallthru
      _
    // Predicated region
    $region14: #{tpu_custom_call.1} parent=1 // pred_check
      _
    $region15: #{tpu_custom_call.1} parent=1 // pred_check_branch
      %17 = sbr.rel (0) target = $region17
    $region16: #{tpu_custom_call.1} parent=1 // pred_region
      _
    $region17: #{tpu_custom_call.1} parent=1 // pred_fallthru
      _
    %p19 = scmp.eq.s32.totalorder 0, 0
    // Predicated region
    $region18: #{tpu_custom_call.1} parent=1 // pred_check
      %p20 = pneg %p19
    $region19: #{tpu_custom_call.1} parent=1 // pred_check_branch
      %22 = sbr.rel (%p20) target = $region21
    $region20: #{tpu_custom_call.1} parent=1 // pred_region
      %v23 = vld [vmem:[%s0] sm:$0xf]
      %v24 = vld [vmem:[%s2] sm:$0x3]
      %vm25 = vcmask 23552
      %v27 = vsel %vm25, %v23, 0
      %vm29 = vcmask 1040384
      %vm30 = vcmask 1041408
      %v31 = vsel %vm29, 4294967295, 65535
      %v32 = vsel %vm30, %v31, 0
      %v34 = vand.u32 %v24, %v32
      %36 = vmatprep.subr.bf16.mxu0 0
      %37 = vmatpush1.bf16.msra.mxu0 %v34
      %38 = vmatprep.subr.bf16.mxu0 0
      %39 = vmatpush1.bf16.msra.mxu0 0
      %40 = vmatprep.subr.bf16.mxu0 0
      %41 = vmatpush1.bf16.msra.mxu0 0
      %42 = vmatprep.subr.bf16.mxu0 0
      %43 = vmatpush1.bf16.msra.mxu0 0
      %44 = vmatprep.subr.bf16.mxu0 0
      %45 = vmatpush1.bf16.msra.mxu0 0
      %46 = vmatprep.subr.bf16.mxu0 0
      %47 = vmatpush1.bf16.msra.mxu0 0
      %48 = vmatprep.subr.bf16.mxu0 0
      %49 = vmatpush1.bf16.msra.mxu0 0
      %50 = vmatprep.subr.bf16.mxu0 0
      %51 = vmatpush1.bf16.msra.mxu0 0
      %52 = vmatprep.subr.bf16.mxu0 0
      %53 = vmatpush1.bf16.msra.mxu0 0
      %54 = vmatprep.subr.bf16.mxu0 0
      %55 = vmatpush1.bf16.msra.mxu0 0
      %56 = vmatprep.subr.bf16.mxu0 0
      %57 = vmatpush1.bf16.msra.mxu0 0
      %58 = vmatprep.subr.bf16.mxu0 0
      %59 = vmatpush1.bf16.msra.mxu0 0
      %60 = vmatprep.subr.bf16.mxu0 0
      %61 = vmatpush1.bf16.msra.mxu0 0
      %62 = vmatprep.subr.bf16.mxu0 0
      %63 = vmatpush1.bf16.msra.mxu0 0
      %64 = vmatprep.subr.bf16.mxu0 0
      %65 = vmatpush1.bf16.msra.mxu0 0
      %66 = vmatprep.subr.bf16.mxu0 0
      %67 = vmatpush1.bf16.msra.mxu0 0
      %68 = vmatprep.mubr.bf16.mxu0 0
      %69 = vmatmul.mubr.bf16.gmra.mrb[0].mxu0 %v27
      %v70 = vpop.f32.mrb[0].mxu0
      %v71 = vadd.f32 0.0, %v70
      %v72 = vpop.f32.mrb[0].mxu0
      %v73 = vpop.f32.mrb[0].mxu0
      %v74 = vpop.f32.mrb[0].mxu0
      %75 = vdwg.mxu0
      %v76 = vpack.c.bf16 %v71, %v71
      %77 = vst [vmem:[#allocation2] sm:$0xf] %v76
      %vm78 = vcmask 7168
      %79 = vst.msk [vmem:[#allocation3] sm:$0xff] %vm78, -inf
      %80 = vst.msk [vmem:[#allocation4] sm:$0xff] %vm78, 0.0
      %81 = vst [vmem:[#allocation5] sm:$0xff] 0.0
    $region21: #{tpu_custom_call.1} parent=1 // pred_fallthru
      _
    %v82 = vld [vmem:[%s1] sm:$0xf]
    %v83 = vld [vmem:[%s3] sm:$0xf]
    %v86 = vunpack.c.l.s4 1983009808
    %v87 = vunpack.c.0.s8 %v86
    %v88 = vlaneseq
    %v89 = vshrl.u32 %v88, 7
    %v90 = vsub.s32 %v87, %v89
    %v91 = vrot.slane %v83, %v90
    %v92 = vcombine.high %v91, %v91
    %vm93 = vcmask 23552
    %v95 = vsel %vm93, %v82, 0
    %vm97 = vcmask 1040384
    %vm98 = vcmask 1041408
    %v99 = vsel %vm97, 4294967295, 65535
    %v100 = vsel %vm98, %v99, 0
    %v102 = vand.u32 %v91, %v100
    %v105 = vand.u32 %v92, %v100
    %107 = vmatprep.subr.bf16.mxu0 %v105
    %108 = vmatpush1.bf16.msra.mxu0 %v102
    %109 = vmatprep.subr.bf16.mxu0 0
    %110 = vmatpush1.bf16.msra.mxu0 0
    %111 = vmatprep.subr.bf16.mxu0 0
    %112 = vmatpush1.bf16.msra.mxu0 0
    %113 = vmatprep.subr.bf16.mxu0 0
    %114 = vmatpush1.bf16.msra.mxu0 0
    %115 = vmatprep.subr.bf16.mxu0 0
    %116 = vmatpush1.bf16.msra.mxu0 0
    %117 = vmatprep.subr.bf16.mxu0 0
    %118 = vmatpush1.bf16.msra.mxu0 0
    %119 = vmatprep.subr.bf16.mxu0 0
    %120 = vmatpush1.bf16.msra.mxu0 0
    %121 = vmatprep.subr.bf16.mxu0 0
    %122 = vmatpush1.bf16.msra.mxu0 0
    %123 = vmatprep.subr.bf16.mxu0 0
    %124 = vmatpush1.bf16.msra.mxu0 0
    %125 = vmatprep.subr.bf16.mxu0 0
    %126 = vmatpush1.bf16.msra.mxu0 0
    %127 = vmatprep.subr.bf16.mxu0 0
    %128 = vmatpush1.bf16.msra.mxu0 0
    %129 = vmatprep.subr.bf16.mxu0 0
    %130 = vmatpush1.bf16.msra.mxu0 0
    %131 = vmatprep.subr.bf16.mxu0 0
    %132 = vmatpush1.bf16.msra.mxu0 0
    %133 = vmatprep.subr.bf16.mxu0 0
    %134 = vmatpush1.bf16.msra.mxu0 0
    %135 = vmatprep.subr.bf16.mxu0 0
    %136 = vmatpush1.bf16.msra.mxu0 0
    %137 = vmatprep.subr.bf16.mxu0 0
    %138 = vmatpush1.bf16.msra.mxu0 0
    %139 = vmatprep.mubr.bf16.mxu0 0
    %140 = vmatmul.mubr.bf16.gmra.mrb[0].mxu0 %v95
    %v141 = vpop.f32.mrb[0].mxu0
    %v142 = vadd.f32 0.0, %v141
    %v143 = vpop.f32.mrb[0].mxu0
    %v144 = vadd.f32 0.0, %v143
    %v145 = vpop.f32.mrb[0].mxu0
    %v146 = vpop.f32.mrb[0].mxu0
    %147 = vdwg.mxu0
    %v148 = vpack.c.bf16 %v142, %v142
    %v149 = vpack.c.bf16 %v144, %v144
    %v150 = vld [vmem:[#allocation2] sm:$0xf]
    %151 = vmatprep.subr.bf16.mxu0 0
    %152 = vmatpush1.bf16.xpose.msra.mxu0 %v148
    %153 = vmatprep.subr.bf16.mxu0 0
    %154 = vmatpush1.bf16.xpose.msra.mxu0 0
    %155 = vmatprep.subr.bf16.mxu0 0
    %156 = vmatpush1.bf16.xpose.msra.mxu0 0
    %157 = vmatprep.subr.bf16.mxu0 0
    %158 = vmatpush1.bf16.xpose.msra.mxu0 0
    %159 = vmatprep.subr.bf16.mxu0 0
    %160 = vmatpush1.bf16.xpose.msra.mxu0 0
    %161 = vmatprep.subr.bf16.mxu0 0
    %162 = vmatpush1.bf16.xpose.msra.mxu0 0
    %163 = vmatprep.subr.bf16.mxu0 0
    %164 = vmatpush1.bf16.xpose.msra.mxu0 0
    %165 = vmatprep.subr.bf16.mxu0 0
    %166 = vmatpush1.bf16.xpose.msra.mxu0 0
    %167 = vmatprep.subr.bf16.mxu0 0
    %168 = vmatpush1.bf16.xpose.msra.mxu0 0
    %169 = vmatprep.subr.bf16.mxu0 0
    %170 = vmatpush1.bf16.xpose.msra.mxu0 0
    %171 = vmatprep.subr.bf16.mxu0 0
    %172 = vmatpush1.bf16.xpose.msra.mxu0 0
    %173 = vmatprep.subr.bf16.mxu0 0
    %174 = vmatpush1.bf16.xpose.msra.mxu0 0
    %175 = vmatprep.subr.bf16.mxu0 0
    %176 = vmatpush1.bf16.xpose.msra.mxu0 0
    %177 = vmatprep.subr.bf16.mxu0 0
    %178 = vmatpush1.bf16.xpose.msra.mxu0 0
    %179 = vmatprep.subr.bf16.mxu0 0
    %180 = vmatpush1.bf16.xpose.msra.mxu0 0
    %181 = vmatprep.subr.bf16.mxu0 0
    %182 = vmatpush1.bf16.xpose.msra.mxu0 0
    %183 = vmatprep.mubr.bf16.mxu0 0
    %184 = vmatmul.mubr.bf16.gmra.mrb[0].mxu0 %v150
    %v185 = vpop.f32.mrb[0].mxu0
    %v186 = vadd.f32 0.0, %v185
    %v187 = vpop.f32.mrb[0].mxu0
    %v188 = vpop.f32.mrb[0].mxu0
    %v189 = vpop.f32.mrb[0].mxu0
    %190 = vdwg.mxu0
    // Predicated region
    $region22: #{tpu_custom_call.1} parent=1 // pred_check
      %p191 = pneg %p19
    $region23: #{tpu_custom_call.1} parent=1 // pred_check_branch
      %193 = sbr.rel (%p191) target = $region25
    $region24: #{tpu_custom_call.1} parent=1 // pred_region
      %v194 = vlaneseq
      %v195 = vand.u32 %v194, 127
      %s196 = smul.u32 0, 8
      %v197 = vstv %s196
      %v198 = vadd.s32 %v195, %v197
      %vm199 = vcmp.lt.s32.totalorder %v198, 6
      %v200 = vsel %vm199, %v186, -1e+30
    $region25: #{tpu_custom_call.1} parent=1 // pred_fallthru
      %v201 = vphi 0, %v200
    %p202 = pneg %p19
    // Predicated region
    $region26: #{tpu_custom_call.1} parent=1 // pred_check
      _
    $region27: #{tpu_custom_call.1} parent=1 // pred_check_branch
      %204 = sbr.rel (%p19) target = $region29
    $region28: #{tpu_custom_call.1} parent=1 // pred_region
      _
    $region29: #{tpu_custom_call.1} parent=1 // pred_fallthru
      %v205 = vphi %v201, %v186
    %v206 = vld [vmem:[#allocation3] sm:$0xff]
    %vm207 = vcmask 64512
    %v208 = vsel %vm207, %v205, -inf
    %209 = vmax.xlane.f32.xlu0 %v208
    %v210 = vpop.xlane.xlu0 %209
    %v211 = vmax.f32 %v206, %v210
    %v212 = vsub.f32 %v206, %v211
    %v213 = vmul.f32 %v212, 1.442695
    %v214 = vpow.pop %v213
    %216 = vset.pattern.permute.xlu0 0
    %217 = vperm.xlu0 %216, %v211
    %v218 = vpop.permute.xlu0 %217
    %v220 = vsub.f32 %v205, %v218
    %v221 = vmul.f32 %v220, 1.442695
    %v222 = vpow.pop %v221
    %v223 = vld [vmem:[#allocation4] sm:$0xff]
    %v224 = vmul.f32 %v214, %v223
    %v225 = vsel %vm207, %v222, 0.0
    %226 = vadd.xlane.f32.xlu0 %v225
    %v227 = vpop.xlane.xlu0 %226
    %v228 = vadd.f32 %v224, %v227
    %vm229 = vcmask 7168
    %230 = vst.msk [vmem:[#allocation4] sm:$0xff] %vm229, %v228
    %v231 = vld [vmem:[#allocation5] sm:$0xff]
    %233 = vset.pattern.permute.xlu0 0
    %234 = vperm.xlu0 %233, %v214
    %v235 = vpop.permute.xlu0 %234
    %v237 = vmul.f32 %v235, %v231
    %v238 = vpack.c.bf16 %v222, %v222
    %v240 = vsel %vm207, %v238, 0
    %vm242 = vcmask 1043456
    %v244 = vsel %vm242, %v149, 0
    %246 = vmatprep.subr.bf16.mxu0 0
    %247 = vmatpush1.bf16.msra.mxu0 %v244
    %248 = vmatprep.subr.bf16.mxu0 0
    %249 = vmatpush1.bf16.msra.mxu0 0
    %250 = vmatprep.subr.bf16.mxu0 0
    %251 = vmatpush1.bf16.msra.mxu0 0
    %252 = vmatprep.subr.bf16.mxu0 0
    %253 = vmatpush1.bf16.msra.mxu0 0
    %254 = vmatprep.subr.bf16.mxu0 0
    %255 = vmatpush1.bf16.msra.mxu0 0
    %256 = vmatprep.subr.bf16.mxu0 0
    %257 = vmatpush1.bf16.msra.mxu0 0
    %258 = vmatprep.subr.bf16.mxu0 0
    %259 = vmatpush1.bf16.msra.mxu0 0
    %260 = vmatprep.subr.bf16.mxu0 0
    %261 = vmatpush1.bf16.msra.mxu0 0
    %262 = vmatprep.subr.bf16.mxu0 0
    %263 = vmatpush1.bf16.msra.mxu0 0
    %264 = vmatprep.subr.bf16.mxu0 0
    %265 = vmatpush1.bf16.msra.mxu0 0
    %266 = vmatprep.subr.bf16.mxu0 0
    %267 = vmatpush1.bf16.msra.mxu0 0
    %268 = vmatprep.subr.bf16.mxu0 0
    %269 = vmatpush1.bf16.msra.mxu0 0
    %270 = vmatprep.subr.bf16.mxu0 0
    %271 = vmatpush1.bf16.msra.mxu0 0
    %272 = vmatprep.subr.bf16.mxu0 0
    %273 = vmatpush1.bf16.msra.mxu0 0
    %274 = vmatprep.subr.bf16.mxu0 0
    %275 = vmatpush1.bf16.msra.mxu0 0
    %276 = vmatprep.subr.bf16.mxu0 0
    %277 = vmatpush1.bf16.msra.mxu0 0
    %278 = vmatprep.mubr.bf16.mxu0 0
    %279 = vmatmul.mubr.bf16.gmra.mrb[0].mxu0 %v240
    %v280 = vpop.f32.mrb[0].mxu0
    %v281 = vadd.f32 0.0, %v280
    %v282 = vpop.f32.mrb[0].mxu0
    %v283 = vpop.f32.mrb[0].mxu0
    %v284 = vpop.f32.mrb[0].mxu0
    %285 = vdwg.mxu0
    %v286 = vadd.f32 %v237, %v281
    %287 = vst [vmem:[#allocation5] sm:$0xff] %v286
    %288 = vst.msk [vmem:[#allocation3] sm:$0xff] %vm229, %v211
    // Predicated region
    $region30: #{tpu_custom_call.1} parent=1 // pred_check
      %p289 = pneg %p19
    $region31: #{tpu_custom_call.1} parent=1 // pred_check_branch
      %291 = sbr.rel (%p289) target = $region33
    $region32: #{tpu_custom_call.1} parent=1 // pred_region
      %v292 = vld [vmem:[#allocation5] sm:$0xff]
      %v293 = vld [vmem:[#allocation4] sm:$0xff]
      %295 = vset.pattern.permute.xlu0 0
      %296 = vperm.xlu0 %295, %v293
      %v297 = vpop.permute.xlu0 %296
      %v299 = vrcp.pop %v297
      %v300 = vmul.f32 %v292, %v299
      %301 = vst [vmem:[#allocation6] sm:$0xff] %v300
    $region33: #{tpu_custom_call.1} parent=1 // pred_fallthru
      _
    // Predicated region
    $region34: #{tpu_custom_call.1} parent=1 // pred_check
      _
    $region35: #{tpu_custom_call.1} parent=1 // pred_check_branch
      %303 = sbr.rel (0) target = $region37
    $region36: #{tpu_custom_call.1} parent=1 // pred_region
      %s305 = ssub.s32 128, 128
      %306 = vsyncadd [#allocation7], %s305
      %s308 = sshll.u32 [#allocation6], 4
      %s309 = int_to_ptr.vmem [resolvable:$true] %s308
      %311 = dma.vmem_to_hbm [thread:$0]  %s309, 128, %s4, [#allocation7]
    $region37: #{tpu_custom_call.1} parent=1 // pred_fallthru
      _
    // Predicated region
    $region38: #{tpu_custom_call.1} parent=1 // pred_check
      _
    $region39: #{tpu_custom_call.1} parent=1 // pred_check_branch
      %313 = sbr.rel (0) target = $region41
    $region40: #{tpu_custom_call.1} parent=1 // pred_region
      %314 = dma.done [#allocation7], 128
    $region41: #{tpu_custom_call.1} parent=1 // pred_fallthru
      _
    %315 = vsyncpa [#allocation7], 1

</llo_original>
